<compile_context>
chip_gen: v5e
topology: v5e:2x2
jax: 0.10.0
libtpu: 0.0.40
codegen_flags: <defaults>
</compile_context>

<pallas_src>
import functools
import math

import jax
import jax.numpy as jnp
from jax.experimental import pallas as pl
from jax.experimental.pallas import tpu as pltpu


# ----------------------------------------------------------------------------
# Fused KxK stride-1 "same" conv + bias + ReLU kernel (all heads merged).
# ----------------------------------------------------------------------------
def _conv_relu_kernel(x_ref, w_ref, b_ref, o_ref, acc_ref, *, K, TH):
    """One (batch, row-tile) block.

    x_ref:   (Hp, Wp, Cin)   whole padded image (VMEM-resident across row tiles)
    w_ref:   (K, K*Cin, Ct)  row taps x (column taps folded with Cin), bf16
    b_ref:   (1, Ct)         f32 bias
    o_ref:   (TH, Wo, Ct)    output row tile
    acc_ref: (TH*Wo, Ct)     f32 VMEM scratch accumulator
    """
    _, Wo, Ct = o_ref.shape
    Cin = x_ref.shape[-1]
    r = pl.program_id(1)
    row0 = pl.multiple_of(r * TH, TH)

    # Load the input row band once; fold the K column taps into the
    # contraction dim -> K deep matmuls instead of K*K shallow ones.
    xband = x_ref[pl.ds(row0, TH + K - 1)]                      # (TH+K-1, Wp, Cin)
    band = jnp.concatenate([xband[:, j:j + Wo, :] for j in range(K)],
                           axis=-1)                             # (TH+K-1, Wo, K*Cin)

    for i in range(K):
        patch = band[i:i + TH].reshape(TH * Wo, K * Cin)
        part = jnp.dot(patch, w_ref[i], preferred_element_type=jnp.float32)
        if i == 0:
            acc_ref[...] = part
        else:
            acc_ref[...] += part

    acc = acc_ref[...] + b_ref[...]
    o_ref[...] = jnp.maximum(acc, 0.0).reshape(TH, Wo, Ct).astype(o_ref.dtype)


def _round_up(v, m):
    return (v + m - 1) // m * m


def fused_conv_relu_nhwc(x, w, b, *, block_rows=8,
                         compute_dtype=jnp.bfloat16, out_dtype=jnp.float32):
    """Stride-1 'same' KxK conv + bias + ReLU.

    x: (N, H, W, Cin) float
    w: (K, K, Cin, Ct)
    b: (Ct,)
    returns: (N, H, W, Ct) out_dtype
    """
    N, H, W, Cin = x.shape
    K = w.shape[0]
    assert w.shape[1] == K and K % 2 == 1, "odd square kernel expected"
    Ct = w.shape[-1]
    pad = K // 2

    # Lane-dense output channels: pad Ct up to a multiple of 128 with zero
    # weights/bias (ReLU keeps the padded lanes at exactly 0); sliced off below.
    Ct_pad = _round_up(Ct, 128)
    if Ct_pad != Ct:
        w = jnp.pad(w, ((0, 0), (0, 0), (0, 0), (0, Ct_pad - Ct)))
        b = jnp.pad(b, ((0, Ct_pad - Ct),))

    TH = max(1, min(block_rows, H))
    Ho_pad = _round_up(H, TH)
    n_row_tiles = Ho_pad // TH

    # Spatial halo padding (+ bottom rows up to the row-tile multiple).
    x = jnp.pad(x, ((0, 0), (pad, pad + (Ho_pad - H)), (pad, pad), (0, 0)))
    Hp, Wp = x.shape[1], x.shape[2]                 # Ho_pad + K - 1, W + K - 1

    x = x.astype(compute_dtype)
    w_k = w.reshape(K, K * Cin, Ct_pad).astype(compute_dtype)  # fold column taps
    b_k = b.reshape(1, Ct_pad).astype(jnp.float32)

    out = pl.pallas_call(
        functools.partial(_conv_relu_kernel, K=K, TH=TH),
        out_shape=jax.ShapeDtypeStruct((N, Ho_pad, W, Ct_pad), out_dtype),
        grid=(N, n_row_tiles),
        in_specs=[
            pl.BlockSpec((None, Hp, Wp, Cin), lambda n, r: (n, 0, 0, 0)),
            pl.BlockSpec((K, K * Cin, Ct_pad), lambda n, r: (0, 0, 0)),
            pl.BlockSpec((1, Ct_pad), lambda n, r: (0, 0)),
        ],
        out_specs=pl.BlockSpec((None, TH, W, Ct_pad), lambda n, r: (n, r, 0, 0)),
        scratch_shapes=[pltpu.VMEM((TH * W, Ct_pad), jnp.float32)],
        compiler_params=pltpu.CompilerParams(
            dimension_semantics=("parallel", "parallel"),
            vmem_limit_bytes=56 * 1024 * 1024,      # safe on v7x (64 MiB/TC)
        ),
    )(x, w_k, b_k)
    return out[:, :H, :, :Ct]


# ----------------------------------------------------------------------------
# Attention module (functional): params in torch layout, heads merged at call.
# ----------------------------------------------------------------------------
def init_attention_params(key, in_channels, out_channels=None, k=3):
    if out_channels is None:
        out_channels = in_channels
    ks = jax.random.split(key, 6)
    std = math.sqrt(2.0 / (in_channels * k * k))

    def w(kk, cout):  # torch Conv2d layout (Cout, Cin, kH, kW)
        return std * jax.random.normal(kk, (cout, in_channels, k, k), jnp.float32)

    def b(kk, cout):
        return 0.01 * jax.random.normal(kk, (cout,), jnp.float32)

    return {
        "conv":    {"w": w(ks[0], out_channels), "b": b(ks[1], out_channels)},
        "w_self":  {"w": w(ks[2], 1),            "b": b(ks[3], 1)},
        "w_cross": {"w": w(ks[4], 1),            "b": b(ks[5], 1)},
    }


def _merge_heads(params):
    """Concatenate conv / w_self / w_cross into one (K,K,Cin,Cout+2) weight."""
    def to_hwio(w_oikk):
        return jnp.transpose(w_oikk, (2, 3, 1, 0))          # (K, K, Cin, Cout)
    w = jnp.concatenate([to_hwio(params["conv"]["w"]),
                         to_hwio(params["w_self"]["w"]),
                         to_hwio(params["w_cross"]["w"])], axis=-1)
    b = jnp.concatenate([params["conv"]["b"],
                         params["w_self"]["b"],
                         params["w_cross"]["b"]], axis=0)
    return w, b


def attention_forward(params, x_nchw, *, block_rows=8,
                      compute_dtype=jnp.bfloat16):
    """x_nchw: (N, Cin, H, W) -> (x_attn, w_self, w_cross) in NCHW."""
    cout = params["conv"]["w"].shape[0]
    w_merged, b_merged = _merge_heads(params)
    x_nhwc = jnp.transpose(x_nchw, (0, 2, 3, 1))
    y = fused_conv_relu_nhwc(x_nhwc, w_merged, b_merged,
                             block_rows=block_rows,
                             compute_dtype=compute_dtype)
    x_attn = jnp.transpose(y[..., :cout], (0, 3, 1, 2))
    w_self = jnp.transpose(y[..., cout:cout + 1], (0, 3, 1, 2))
    w_cross = jnp.transpose(y[..., cout + 1:cout + 2], (0, 3, 1, 2))
    return x_attn, w_self, w_cross


# ----------------------------------------------------------------------------
# Pure-JAX reference (semantics of ConvActivation = Conv2d(k=3,s=1,p=1)+ReLU).
# ----------------------------------------------------------------------------
def _ref_conv_relu(x_nchw, w_oikk, b_o):
    w_hwio = jnp.transpose(w_oikk, (2, 3, 1, 0))
    x_nhwc = jnp.transpose(x_nchw, (0, 2, 3, 1))
    y = jax.lax.conv_general_dilated(
        x_nhwc, w_hwio, window_strides=(1, 1), padding="SAME",
        dimension_numbers=("NHWC", "HWIO", "NHWC"))
    y = jnp.maximum(y + b_o[None, None, None, :], 0.0)
    return jnp.transpose(y, (0, 3, 1, 2))


# ----------------------------------------------------------------------------
if __name__ == "__main__":
    N, Cin, H, W = 2, 32, 16, 16
    Cout = 32                                   # out_channels defaults to in_channels

    key = jax.random.PRNGKey(0)
    params = init_attention_params(key, Cin, Cout)
    x = jax.random.uniform(jax.random.fold_in(key, 123), (N, Cin, H, W), jnp.float32)

    x_attn, w_self, w_cross = attention_forward(params, x, block_rows=8)
    x_attn, w_self, w_cross = jax.block_until_ready((x_attn, w_self, w_cross))

    assert x_attn.shape == (N, Cout, H, W), x_attn.shape
    assert w_self.shape == (N, 1, H, W), w_self.shape
    assert w_cross.shape == (N, 1, H, W), w_cross.shape
    assert bool(jnp.all(jnp.isfinite(x_attn)))
    assert bool(jnp.all(jnp.isfinite(w_self)))
    assert bool(jnp.all(jnp.isfinite(w_cross)))

    # Check against the pure-JAX (f32) reference; bf16 MXU inputs -> loose tol.
    ref_attn = _ref_conv_relu(x, params["conv"]["w"], params["conv"]["b"])
    ref_self = _ref_conv_relu(x, params["w_self"]["w"], params["w_self"]["b"])
    ref_cross = _ref_conv_relu(x, params["w_cross"]["w"], params["w_cross"]["b"])
    assert bool(jnp.allclose(x_attn, ref_attn, atol=5e-2, rtol=5e-2))
    assert bool(jnp.allclose(w_self, ref_self, atol=5e-2, rtol=5e-2))
    assert bool(jnp.allclose(w_cross, ref_cross, atol=5e-2, rtol=5e-2))

    print("KERNEL_OK")
</pallas_src>

<mosaic_0001>
module attributes {stable_mosaic.version = 11 : i64} {
  func.func @_conv_relu_kernel(%arg0: i32, %arg1: i32, %arg2: memref<1x18x18x32xbf16, #tpu.memory_space<vmem>>, %arg3: memref<3x96x128xbf16, #tpu.memory_space<vmem>>, %arg4: memref<1x128xf32, #tpu.memory_space<vmem>>, %arg5: memref<1x8x16x128xf32, #tpu.memory_space<vmem>>, %arg6: memref<128x128xf32, #tpu.memory_space<vmem>>) attributes {dimension_semantics = [#tpu.dimension_semantics<parallel>, #tpu.dimension_semantics<parallel>], iteration_bounds = array<i64: 2, 2>, scalar_prefetch = 0 : i64, scratch_operands = 1 : i64, tpu.core_type = #tpu.core_type<tc>, window_params = [{transform_indices = @transform_0, window_bounds = array<i64: 1, 18, 18, 32>}, {pipeline_mode = #tpu.pipeline_mode<synchronous>, transform_indices = @transform_1, window_bounds = array<i64: 3, 96, 128>}, {pipeline_mode = #tpu.pipeline_mode<synchronous>, transform_indices = @transform_2, window_bounds = array<i64: 1, 128>}, {transform_indices = @transform_3, window_bounds = array<i64: 1, 8, 16, 128>}]} {
    %c8_i32 = arith.constant 8 : i32
    %0 = arith.muli %arg1, %c8_i32 : i32
    %1 = tpu.assume_multiple %0, 8 : i32
    %c0 = arith.constant 0 : index
    %2 = arith.index_cast %1 : i32 to index
    %c0_0 = arith.constant 0 : index
    %c0_1 = arith.constant 0 : index
    %3 = vector.load %arg2[%c0, %2, %c0_0, %c0_1] : memref<1x18x18x32xbf16, #tpu.memory_space<vmem>>, vector<1x10x18x32xbf16>
    %4 = vector.shape_cast %3 : vector<1x10x18x32xbf16> to vector<10x18x32xbf16>
    %5 = vector.extract_strided_slice %4 {offsets = [0, 0, 0], sizes = [10, 16, 32], strides = [1, 1, 1]} : vector<10x18x32xbf16> to vector<10x16x32xbf16>
    %6 = vector.extract_strided_slice %4 {offsets = [0, 1, 0], sizes = [10, 16, 32], strides = [1, 1, 1]} : vector<10x18x32xbf16> to vector<10x16x32xbf16>
    %7 = vector.extract_strided_slice %4 {offsets = [0, 2, 0], sizes = [10, 16, 32], strides = [1, 1, 1]} : vector<10x18x32xbf16> to vector<10x16x32xbf16>
    %8 = tpu.concatenate %5, %6, %7 in 2 : vector<10x16x32xbf16>, vector<10x16x32xbf16>, vector<10x16x32xbf16> -> vector<10x16x96xbf16>
    %9 = vector.extract_strided_slice %8 {offsets = [0, 0, 0], sizes = [8, 16, 96], strides = [1, 1, 1]} : vector<10x16x96xbf16> to vector<8x16x96xbf16>
    %10 = vector.shape_cast %9 : vector<8x16x96xbf16> to vector<128x96xbf16>
    %c0_2 = arith.constant 0 : index
    %c0_3 = arith.constant 0 : index
    %c0_4 = arith.constant 0 : index
    %11 = vector.load %arg3[%c0_2, %c0_3, %c0_4] : memref<3x96x128xbf16, #tpu.memory_space<vmem>>, vector<1x96x128xbf16>
    %12 = vector.shape_cast %11 : vector<1x96x128xbf16> to vector<96x128xbf16>
    %cst = arith.constant dense<0.000000e+00> : vector<128x128xf32>
    %13 = tpu.matmul %10, %12, %cst {dimension_numbers = #tpu.dot_dimension_numbers<[1], [0], [0], [1], [0, 0, 1, 1], [], []>} : vector<128x96xbf16>, vector<96x128xbf16>, vector<128x128xf32> -> vector<128x128xf32>
    %c0_5 = arith.constant 0 : index
    %c0_6 = arith.constant 0 : index
    %14 = vector.load %arg6[%c0_5, %c0_6] : memref<128x128xf32, #tpu.memory_space<vmem>>, vector<128x128xf32>
    tpu.vector_store %arg6[%c0_5, %c0_6], %13 {strides = array<i32>} : memref<128x128xf32, #tpu.memory_space<vmem>>, vector<128x128xf32>,
    %15 = vector.extract_strided_slice %8 {offsets = [1, 0, 0], sizes = [8, 16, 96], strides = [1, 1, 1]} : vector<10x16x96xbf16> to vector<8x16x96xbf16>
    %16 = vector.shape_cast %15 : vector<8x16x96xbf16> to vector<128x96xbf16>
    %c1 = arith.constant 1 : index
    %c0_7 = arith.constant 0 : index
    %c0_8 = arith.constant 0 : index
    %17 = vector.load %arg3[%c1, %c0_7, %c0_8] : memref<3x96x128xbf16, #tpu.memory_space<vmem>>, vector<1x96x128xbf16>
    %18 = vector.shape_cast %17 : vector<1x96x128xbf16> to vector<96x128xbf16>
    %cst_9 = arith.constant dense<0.000000e+00> : vector<128x128xf32>
    %19 = tpu.matmul %16, %18, %cst_9 {dimension_numbers = #tpu.dot_dimension_numbers<[1], [0], [0], [1], [0, 0, 1, 1], [], []>} : vector<128x96xbf16>, vector<96x128xbf16>, vector<128x128xf32> -> vector<128x128xf32>
    %c0_10 = arith.constant 0 : index
    %c0_11 = arith.constant 0 : index
    %20 = vector.load %arg6[%c0_10, %c0_11] : memref<128x128xf32, #tpu.memory_space<vmem>>, vector<128x128xf32>
    %21 = arith.addf %20, %19 : vector<128x128xf32>
    %c0_12 = arith.constant 0 : index
    %c0_13 = arith.constant 0 : index
    %22 = vector.load %arg6[%c0_12, %c0_13] : memref<128x128xf32, #tpu.memory_space<vmem>>, vector<128x128xf32>
    tpu.vector_store %arg6[%c0_12, %c0_13], %21 {strides = array<i32>} : memref<128x128xf32, #tpu.memory_space<vmem>>, vector<128x128xf32>,
    %23 = vector.extract_strided_slice %8 {offsets = [2, 0, 0], sizes = [8, 16, 96], strides = [1, 1, 1]} : vector<10x16x96xbf16> to vector<8x16x96xbf16>
    %24 = vector.shape_cast %23 : vector<8x16x96xbf16> to vector<128x96xbf16>
    %c2 = arith.constant 2 : index
    %c0_14 = arith.constant 0 : index
    %c0_15 = arith.constant 0 : index
    %25 = vector.load %arg3[%c2, %c0_14, %c0_15] : memref<3x96x128xbf16, #tpu.memory_space<vmem>>, vector<1x96x128xbf16>
    %26 = vector.shape_cast %25 : vector<1x96x128xbf16> to vector<96x128xbf16>
    %cst_16 = arith.constant dense<0.000000e+00> : vector<128x128xf32>
    %27 = tpu.matmul %24, %26, %cst_16 {dimension_numbers = #tpu.dot_dimension_numbers<[1], [0], [0], [1], [0, 0, 1, 1], [], []>} : vector<128x96xbf16>, vector<96x128xbf16>, vector<128x128xf32> -> vector<128x128xf32>
    %c0_17 = arith.constant 0 : index
    %c0_18 = arith.constant 0 : index
    %28 = vector.load %arg6[%c0_17, %c0_18] : memref<128x128xf32, #tpu.memory_space<vmem>>, vector<128x128xf32>
    %29 = arith.addf %28, %27 : vector<128x128xf32>
    %c0_19 = arith.constant 0 : index
    %c0_20 = arith.constant 0 : index
    %30 = vector.load %arg6[%c0_19, %c0_20] : memref<128x128xf32, #tpu.memory_space<vmem>>, vector<128x128xf32>
    tpu.vector_store %arg6[%c0_19, %c0_20], %29 {strides = array<i32>} : memref<128x128xf32, #tpu.memory_space<vmem>>, vector<128x128xf32>,
    %c0_21 = arith.constant 0 : index
    %c0_22 = arith.constant 0 : index
    %31 = vector.load %arg6[%c0_21, %c0_22] : memref<128x128xf32, #tpu.memory_space<vmem>>, vector<128x128xf32>
    %c0_23 = arith.constant 0 : index
    %c0_24 = arith.constant 0 : index
    %32 = vector.load %arg4[%c0_23, %c0_24] : memref<1x128xf32, #tpu.memory_space<vmem>>, vector<1x128xf32>
    %33 = vector.broadcast %32 : vector<1x128xf32> to vector<128x128xf32>
    %34 = arith.addf %31, %33 : vector<128x128xf32>
    %cst_25 = arith.constant 0.000000e+00 : f32
    %35 = vector.broadcast %cst_25 : f32 to vector<128x128xf32>
    %36 = arith.maximumf %34, %35 : vector<128x128xf32>
    %37 = vector.shape_cast %36 : vector<128x128xf32> to vector<8x16x128xf32>
    %c0_26 = arith.constant 0 : index
    %c0_27 = arith.constant 0 : index
    %c0_28 = arith.constant 0 : index
    %c0_29 = arith.constant 0 : index
    %38 = vector.load %arg5[%c0_26, %c0_27, %c0_28, %c0_29] : memref<1x8x16x128xf32, #tpu.memory_space<vmem>>, vector<1x8x16x128xf32>
    %39 = vector.shape_cast %38 : vector<1x8x16x128xf32> to vector<8x16x128xf32>
    %40 = vector.shape_cast %37 : vector<8x16x128xf32> to vector<1x8x16x128xf32>
    tpu.vector_store %arg5[%c0_26, %c0_27, %c0_28, %c0_29], %40 {strides = array<i32>} : memref<1x8x16x128xf32, #tpu.memory_space<vmem>>, vector<1x8x16x128xf32>,
    return
  }
  func.func @transform_0(%arg0: i32, %arg1: i32) -> (i32, i32, i32, i32) {
    %c0_i32 = arith.constant 0 : i32
    %c0_i32_0 = arith.constant 0 : i32
    %c0_i32_1 = arith.constant 0 : i32
    %c0_i32_2 = arith.constant 0 : i32
    return %arg0, %c0_i32, %c0_i32_0, %c0_i32_1 : i32, i32, i32, i32
  }
  func.func @transform_1(%arg0: i32, %arg1: i32) -> (i32, i32, i32) {
    %c0_i32 = arith.constant 0 : i32
    %c0_i32_0 = arith.constant 0 : i32
    %c0_i32_1 = arith.constant 0 : i32
    %c0_i32_2 = arith.constant 0 : i32
    return %c0_i32, %c0_i32_0, %c0_i32_1 : i32, i32, i32
  }
  func.func @transform_2(%arg0: i32, %arg1: i32) -> (i32, i32) {
    %c0_i32 = arith.constant 0 : i32
    %c0_i32_0 = arith.constant 0 : i32
    %c0_i32_1 = arith.constant 0 : i32
    return %c0_i32, %c0_i32_0 : i32, i32
  }
  func.func @transform_3(%arg0: i32, %arg1: i32) -> (i32, i32, i32, i32) {
    %c0_i32 = arith.constant 0 : i32
    %c0_i32_0 = arith.constant 0 : i32
    %c0_i32_1 = arith.constant 0 : i32
    return %arg0, %arg1, %c0_i32, %c0_i32_0 : i32, i32, i32, i32
  }
}

</mosaic_0001>

<llo_original>
// kernel: tpu_custom_call.1
$region0: #{tpu_custom_call.1}
  #allocation0 [shape = 'u32[]', space=smem, size = 0x4, offset = 0x4, fixed_abs, tag = 'smem constant byte address 0x4 - core index']
  #allocation1 [shape = 'u32[72,128]{1,0:T(1,128)}', space=vmem, size = 0x9000, scoped, tag = 'internal scratch']
  #allocation2 [shape = 'f32[128,128]{1,0:T(8,128)}', space=vmem, size = 0x10000, scoped, tag = 'scratch operand']
  %s0 = inlined_call_operand.vmem [shape: bf16[2,18,18,32], index: 0, kind: input, shape index: {}]
  %s1 = inlined_call_operand.vmem [shape: bf16[3,96,128], index: 1, kind: input, shape index: {}]
  %s2 = inlined_call_operand.vmem [shape: f32[1,128], index: 2, kind: input, shape index: {}]
  %s3 = inlined_call_operand.hbm [shape: f32[2,16,16,128], index: 3, kind: output, shape index: {}]
  %s4 = sld [smem:[#allocation0]]
  $region45: #{tpu_custom_call.1} parent=0
    _
  %s6 = ssub.s32 1, %s4
  %s7 = scalar_select 0, %s6, %s4
  $region1: #{tpu_custom_call.1} parent=0
    #allocation3 [shape = 'u8[131072]{0}', space=vmem, size = 0x20000, scoped, tag = 'output window, operand 0']
    #allocation4 [shape = 's32[2]{0}', space=sflag, size = 0x8, scoped, tag = 'scoped memory for tpu_custom_call.1']
    %8 = vsyncpa [#allocation4], 0
    %s9 = scalar_lea.sflag [#allocation4], 1
    %10 = vsyncpa %s9, 0
    loop: start=0, step=1, limit=6
    $region2: #{tpu_custom_call.1} parent=1 // loop_pre_header
      _
    $region3: #{tpu_custom_call.1} parent=1 // loop_header
      %s12 = sphi 0, %s16
      %p13 = scmp.ge.s32.totalorder %s12, 6
      %s19 = sphi 0, %s31
      %s20 = sphi 0, %s27
      %s21 = sphi 0, %s19
      %s22 = sphi 0, %s20
      %s23 = sphi 0, %s21
      %s24 = sphi 0, %s22
      %s34 = sphi 0, %s36
      %s37 = sphi 0, %s34
      %s38 = sphi 0, %s37
      %s54 = sphi 0, %s38
      %s58 = sphi 0, %s58
      %s60 = sphi 0, %s58
      %s61 = sphi 0, %s60
      %s75 = sphi 0, %s61
      %s79 = sphi 0, %s79
      %s81 = sphi 0, %s79
      %s82 = sphi 0, %s81
      %s96 = sphi 0, %s82
      %s104 = sphi 0, %s106
      %s107 = sphi 0, %s104
      %s108 = sphi 0, %s107
      %s124 = sphi 0, %s108
    $region4: #{tpu_custom_call.1} parent=1 // loop_header_branch
      %15 = sbr.rel (%p13) target = $region8
    $region5: #{tpu_custom_call.1} parent=1 // loop_body
      %s17 = ssub.s32 %s12, 1
      %s18 = ssub.s32 %s12, 2
      %s25 = sadd.s32 1, %s20
      %p26 = scmp.ge.s32.totalorder %s25, 2
      %s27 = scalar_select %p26, 0, %s25
      %s28 = sadd.s32 1, %s19
      %s29 = scalar_select %p26, %s28, %s19
      %p30 = scmp.ge.s32.totalorder %s29, 2
      %s31 = scalar_select %p30, 0, %s29
      %s32 = ssub.s32 %s19, %s31
      %p33 = scmp.eq.s32.totalorder %s32, 0
      %s35 = sadd.s32 %s34, 1
      %s36 = scalar_select %p33, %s34, %s35
      %p39 = pneg %p33
      %p40 = scmp.eq.s32.totalorder %s12, 3
      %p41 = por %p39, %p40
      %p42 = scmp.ne.s32.totalorder %s34, %s37
      %p43 = scmp.eq.s32.totalorder %s12, 0
      %p44 = por %p42, %p43
      %p45 = scmp.ne.s32.totalorder %s34, %s37
      %p46 = scmp.eq.s32.totalorder %s17, 3
      %p47 = por %p45, %p46
      %p48 = scmp.ne.s32.totalorder %s37, %s38
      %p49 = scmp.eq.s32.totalorder %s17, 0
      %p50 = por %p48, %p49
      %p51 = scmp.ne.s32.totalorder %s37, %s38
      %p52 = scmp.eq.s32.totalorder %s18, 3
      %p53 = por %p51, %p52
      %p55 = scmp.ne.s32.totalorder %s38, %s54
      %p56 = scmp.eq.s32.totalorder %s18, 0
      %p57 = por %p55, %p56
      %s59 = sadd.s32 %s58, 1
      %p62 = scmp.eq.s32.totalorder %s12, 3
      %p63 = scmp.ne.s32.totalorder %s58, %s60
      %p64 = scmp.eq.s32.totalorder %s12, 0
      %p65 = por %p63, %p64
      %p66 = scmp.ne.s32.totalorder %s58, %s60
      %p67 = scmp.eq.s32.totalorder %s17, 3
      %p68 = por %p66, %p67
      %p69 = scmp.ne.s32.totalorder %s60, %s61
      %p70 = scmp.eq.s32.totalorder %s17, 0
      %p71 = por %p69, %p70
      %p72 = scmp.ne.s32.totalorder %s60, %s61
      %p73 = scmp.eq.s32.totalorder %s18, 3
      %p74 = por %p72, %p73
      %p76 = scmp.ne.s32.totalorder %s61, %s75
      %p77 = scmp.eq.s32.totalorder %s18, 0
      %p78 = por %p76, %p77
      %s80 = sadd.s32 %s79, 1
      %p83 = scmp.eq.s32.totalorder %s12, 3
      %p84 = scmp.ne.s32.totalorder %s79, %s81
      %p85 = scmp.eq.s32.totalorder %s12, 0
      %p86 = por %p84, %p85
      %p87 = scmp.ne.s32.totalorder %s79, %s81
      %p88 = scmp.eq.s32.totalorder %s17, 3
      %p89 = por %p87, %p88
      %p90 = scmp.ne.s32.totalorder %s81, %s82
      %p91 = scmp.eq.s32.totalorder %s17, 0
      %p92 = por %p90, %p91
      %p93 = scmp.ne.s32.totalorder %s81, %s82
      %p94 = scmp.eq.s32.totalorder %s18, 3
      %p95 = por %p93, %p94
      %p97 = scmp.ne.s32.totalorder %s82, %s96
      %p98 = scmp.eq.s32.totalorder %s18, 0
      %p99 = por %p97, %p98
      %s100 = ssub.s32 %s19, %s31
      %s101 = ssub.s32 %s20, %s27
      %s102 = sor.u32 %s100, %s101
      %p103 = scmp.eq.s32.totalorder %s102, 0
      %s105 = sadd.s32 %s104, 1
      %s106 = scalar_select %p103, %s104, %s105
      %p109 = pneg %p103
      %p110 = scmp.eq.s32.totalorder %s12, 3
      %p111 = por %p109, %p110
      %p112 = scmp.ne.s32.totalorder %s104, %s107
      %p113 = scmp.eq.s32.totalorder %s12, 0
      %p114 = por %p112, %p113
      %p115 = scmp.ne.s32.totalorder %s104, %s107
      %p116 = scmp.eq.s32.totalorder %s17, 3
      %p117 = por %p115, %p116
      %p118 = scmp.ne.s32.totalorder %s107, %s108
      %p119 = scmp.eq.s32.totalorder %s17, 0
      %p120 = por %p118, %p119
      %p121 = scmp.ne.s32.totalorder %s107, %s108
      %p122 = scmp.eq.s32.totalorder %s18, 3
      %p123 = por %p121, %p122
      %p125 = scmp.ne.s32.totalorder %s108, %s124
      %p126 = scmp.eq.s32.totalorder %s18, 0
      %p127 = por %p125, %p126
      %p128 = scmp.le.s32.totalorder 1, %s12
      %p129 = scmp.lt.s32.totalorder %s12, 5
      %p130 = pnand %p128, %p129
      %p131 = pneg %p130
      // Predicated region
      $region9: #{tpu_custom_call.1} parent=5 // pred_check
        _
      $region10: #{tpu_custom_call.1} parent=5 // pred_check_branch
        %133 = sbr.rel (%p130) target = $region12
      $region11: #{tpu_custom_call.1} parent=5 // pred_region
        %s134 = ssub.s32 %s12, 1
        // Predicated region
        $region13: #{tpu_custom_call.1} parent=11 // pred_check
          %p135 = pneg %p71
        $region14: #{tpu_custom_call.1} parent=11 // pred_check_branch
          %137 = sbr.rel (%p135) target = $region16
        $region15: #{tpu_custom_call.1} parent=11 // pred_region
          _
        $region16: #{tpu_custom_call.1} parent=11 // pred_fallthru
          _
        // Predicated region
        $region17: #{tpu_custom_call.1} parent=11 // pred_check
          %p138 = pneg %p92
        $region18: #{tpu_custom_call.1} parent=11 // pred_check_branch
          %140 = sbr.rel (%p138) target = $region20
        $region19: #{tpu_custom_call.1} parent=11 // pred_region
          _
        $region20: #{tpu_custom_call.1} parent=11 // pred_fallthru
          _
      $region12: #{tpu_custom_call.1} parent=5 // pred_fallthru
        _
      %p141 = scmp.lt.s32.totalorder %s12, 4
      // Predicated region
      $region21: #{tpu_custom_call.1} parent=5 // pred_check
        %p142 = pneg %p141
      $region22: #{tpu_custom_call.1} parent=5 // pred_check_branch
        %144 = sbr.rel (%p142) target = $region24
      $region23: #{tpu_custom_call.1} parent=5 // pred_region
        // Predicated region
        $region25: #{tpu_custom_call.1} parent=23 // pred_check
          %p145 = pneg %p44
        $region26: #{tpu_custom_call.1} parent=23 // pred_check_branch
          %147 = sbr.rel (%p145) target = $region28
        $region27: #{tpu_custom_call.1} parent=23 // pred_region
          %p148 = scmp.lt.s32.totalorder %s19, 1
          %s149 = scalar_select %p148, %s19, 1
          %s150 = smul.addr %s149, 54
          %s151 = smul.addr %s150, 4
          %s152 = scalar_lea.vmem %s0, %s151
        $region28: #{tpu_custom_call.1} parent=23 // pred_fallthru
          _
      $region24: #{tpu_custom_call.1} parent=5 // pred_fallthru
        _
      %p153 = scmp.le.s32.totalorder 1, %s12
      %p154 = scmp.lt.s32.totalorder %s12, 5
      %p155 = pnand %p153, %p154
      %p156 = pneg %p155
      // Predicated region
      $region29: #{tpu_custom_call.1} parent=5 // pred_check
        _
      $region30: #{tpu_custom_call.1} parent=5 // pred_check_branch
        %158 = sbr.rel (%p155) target = $region32
      $region31: #{tpu_custom_call.1} parent=5 // pred_region
        %s159 = ssub.s32 %s12, 1
        %p160 = scmp.lt.s32.totalorder %s21, 1
        %s161 = scalar_select %p160, %s21, 1
        %s162 = smul.addr %s161, 54
        %s163 = smul.addr %s162, 4
        %s164 = scalar_lea.vmem %s0, %s163
        %p165 = pneg %p50
        %p166 = pneg %p47
        %p167 = pneg %p71
        %p168 = pneg %p68
        %p169 = pneg %p92
        %p170 = pneg %p89
        %p171 = pneg %p120
        %p172 = pneg %p117
        %s173 = sand.u32 %s107, 1
        %s174 = scalar_lea.sflag [#allocation4], %s173
        %s175 = sand.u32 %s107, 1
        %s176 = smul.addr %s175, 128
        %s177 = scalar_lea.vmem [#allocation3], %s176
        %p178 = scmp.lt.s32.totalorder %s21, 1
        %s179 = scalar_select %p178, %s21, 1
        %s180 = smul.addr %s179, 54
        %s181 = smul.addr %s180, 4
        %s182 = scalar_lea.vmem %s0, %s181
        %s183 = smul.u32 8, %s22
        %s185 = smul.u32 %s22, 8
        %s186 = smul.u32 %s185, 3
        %s187 = smul.addr %s186, 4
        %s188 = scalar_lea.vmem %s182, %s187
        %v189 = vld [vmem:[%s188] sm:$0xf]
        %v190 = vld [vmem:[%s188 + $0x4] sm:$0xf]
        %v191 = vld [vmem:[%s188 + $0x8] sm:$0x1]
        %v192 = vld [vmem:[%s188 + $0xc] sm:$0xf]
        %v193 = vld [vmem:[%s188 + $0x10] sm:$0xf]
        %v194 = vld [vmem:[%s188 + $0x14] sm:$0x1]
        %v195 = vld [vmem:[%s188 + $0x18] sm:$0xf]
        %v196 = vld [vmem:[%s188 + $0x1c] sm:$0xf]
        %v197 = vld [vmem:[%s188 + $0x20] sm:$0x1]
        %v198 = vld [vmem:[%s188 + $0x24] sm:$0xf]
        %v199 = vld [vmem:[%s188 + $0x28] sm:$0xf]
        %v200 = vld [vmem:[%s188 + $0x2c] sm:$0x1]
        %v201 = vld [vmem:[%s188 + $0x30] sm:$0xf]
        %v202 = vld [vmem:[%s188 + $0x34] sm:$0xf]
        %v203 = vld [vmem:[%s188 + $0x38] sm:$0x1]
        %v204 = vld [vmem:[%s188 + $0x3c] sm:$0xf]
        %v205 = vld [vmem:[%s188 + $0x40] sm:$0xf]
        %v206 = vld [vmem:[%s188 + $0x44] sm:$0x1]
        %v207 = vld [vmem:[%s188 + $0x48] sm:$0xf]
        %v208 = vld [vmem:[%s188 + $0x4c] sm:$0xf]
        %v209 = vld [vmem:[%s188 + $0x50] sm:$0x1]
        %v210 = vld [vmem:[%s188 + $0x54] sm:$0xf]
        %v211 = vld [vmem:[%s188 + $0x58] sm:$0xf]
        %v212 = vld [vmem:[%s188 + $0x5c] sm:$0x1]
        %v213 = vld [vmem:[%s188 + $0x60] sm:$0xf]
        %v214 = vld [vmem:[%s188 + $0x64] sm:$0xf]
        %v215 = vld [vmem:[%s188 + $0x68] sm:$0x1]
        %v216 = vld [vmem:[%s188 + $0x6c] sm:$0xf]
        %v217 = vld [vmem:[%s188 + $0x70] sm:$0xf]
        %v218 = vld [vmem:[%s188 + $0x74] sm:$0x1]
        %v239 = vunpack.c.l.b16 %v189
        %v240 = vunpack.c.l.b16 %v190
        %v241 = vunpack.c.l.b16 %v192
        %v242 = vunpack.c.l.b16 %v193
        %v243 = vunpack.c.l.b16 %v195
        %v244 = vunpack.c.l.b16 %v196
        %v245 = vunpack.c.l.b16 %v198
        %v246 = vunpack.c.l.b16 %v199
        %v247 = vunpack.c.l.b16 %v201
        %v248 = vunpack.c.l.b16 %v202
        %v249 = vunpack.c.l.b16 %v204
        %v250 = vunpack.c.l.b16 %v205
        %v251 = vunpack.c.l.b16 %v207
        %v252 = vunpack.c.l.b16 %v208
        %v253 = vunpack.c.l.b16 %v210
        %v254 = vunpack.c.l.b16 %v211
        %v255 = vunpack.c.l.b16 %v213
        %v256 = vunpack.c.l.b16 %v214
        %v257 = vunpack.c.l.b16 %v216
        %v258 = vunpack.c.l.b16 %v217
        %v259 = vpack.c.b16 %v240, %v239
        %v260 = vpack.c.b16 %v242, %v241
        %v261 = vpack.c.b16 %v244, %v243
        %v262 = vpack.c.b16 %v246, %v245
        %v263 = vpack.c.b16 %v248, %v247
        %v264 = vpack.c.b16 %v250, %v249
        %v265 = vpack.c.b16 %v252, %v251
        %v266 = vpack.c.b16 %v254, %v253
        %v267 = vpack.c.b16 %v256, %v255
        %v268 = vpack.c.b16 %v258, %v257
        %v279 = vunpack.c.l.b16 %v191
        %v280 = vunpack.c.l.b16 %v194
        %v281 = vunpack.c.l.b16 %v197
        %v282 = vunpack.c.l.b16 %v200
        %v283 = vunpack.c.l.b16 %v203
        %v284 = vunpack.c.l.b16 %v206
        %v285 = vunpack.c.l.b16 %v209
        %v286 = vunpack.c.l.b16 %v212
        %v287 = vunpack.c.l.b16 %v215
        %v288 = vunpack.c.l.b16 %v218
        %v289 = vpack.c.b16 %v279, %v279
        %v290 = vpack.c.b16 %v280, %v280
        %v291 = vpack.c.b16 %v281, %v281
        %v292 = vpack.c.b16 %v282, %v282
        %v293 = vpack.c.b16 %v283, %v283
        %v294 = vpack.c.b16 %v284, %v284
        %v295 = vpack.c.b16 %v285, %v285
        %v296 = vpack.c.b16 %v286, %v286
        %v297 = vpack.c.b16 %v287, %v287
        %v298 = vpack.c.b16 %v288, %v288
        %vm299 = vsmask.f32 7424
        %v301 = vshrl.u32 %v259, 16
        %v303 = vshll.u32 %v259, 16
        %v305 = vrot.slane %v303, 1
        %v306 = vor.u32 %v301, %v305
        %v308 = vshll.u32 %v289, 16
        %v310 = vrot.slane %v308, 1
        %v311 = vsel %vm299, %v306, %v310
        %v313 = vshrl.u32 %v260, 16
        %v315 = vshll.u32 %v260, 16
        %v317 = vrot.slane %v315, 1
        %v318 = vor.u32 %v313, %v317
        %v320 = vshll.u32 %v290, 16
        %v322 = vrot.slane %v320, 1
        %v323 = vsel %vm299, %v318, %v322
        %v325 = vshrl.u32 %v261, 16
        %v327 = vshll.u32 %v261, 16
        %v329 = vrot.slane %v327, 1
        %v330 = vor.u32 %v325, %v329
        %v332 = vshll.u32 %v291, 16
        %v334 = vrot.slane %v332, 1
        %v335 = vsel %vm299, %v330, %v334
        %v337 = vshrl.u32 %v262, 16
        %v339 = vshll.u32 %v262, 16
        %v341 = vrot.slane %v339, 1
        %v342 = vor.u32 %v337, %v341
        %v344 = vshll.u32 %v292, 16
        %v346 = vrot.slane %v344, 1
        %v347 = vsel %vm299, %v342, %v346
        %v349 = vshrl.u32 %v263, 16
        %v351 = vshll.u32 %v263, 16
        %v353 = vrot.slane %v351, 1
        %v354 = vor.u32 %v349, %v353
        %v356 = vshll.u32 %v293, 16
        %v358 = vrot.slane %v356, 1
        %v359 = vsel %vm299, %v354, %v358
        %v361 = vshrl.u32 %v264, 16
        %v363 = vshll.u32 %v264, 16
        %v365 = vrot.slane %v363, 1
        %v366 = vor.u32 %v361, %v365
        %v368 = vshll.u32 %v294, 16
        %v370 = vrot.slane %v368, 1
        %v371 = vsel %vm299, %v366, %v370
        %v373 = vshrl.u32 %v265, 16
        %v375 = vshll.u32 %v265, 16
        %v377 = vrot.slane %v375, 1
        %v378 = vor.u32 %v373, %v377
        %v380 = vshll.u32 %v295, 16
        %v382 = vrot.slane %v380, 1
        %v383 = vsel %vm299, %v378, %v382
        %v385 = vshrl.u32 %v266, 16
        %v387 = vshll.u32 %v266, 16
        %v389 = vrot.slane %v387, 1
        %v390 = vor.u32 %v385, %v389
        %v392 = vshll.u32 %v296, 16
        %v394 = vrot.slane %v392, 1
        %v395 = vsel %vm299, %v390, %v394
        %v397 = vshrl.u32 %v267, 16
        %v399 = vshll.u32 %v267, 16
        %v401 = vrot.slane %v399, 1
        %v402 = vor.u32 %v397, %v401
        %v404 = vshll.u32 %v297, 16
        %v406 = vrot.slane %v404, 1
        %v407 = vsel %vm299, %v402, %v406
        %v409 = vshrl.u32 %v268, 16
        %v411 = vshll.u32 %v268, 16
        %v413 = vrot.slane %v411, 1
        %v414 = vor.u32 %v409, %v413
        %v416 = vshll.u32 %v298, 16
        %v418 = vrot.slane %v416, 1
        %v419 = vsel %vm299, %v414, %v418
        %420 = vrot.lane.b32.xlu0 %v311, 32
        %v421 = vpop.permute.xlu0 %420
        %422 = vrot.lane.b32.xlu0 %v323, 32
        %v423 = vpop.permute.xlu0 %422
        %424 = vrot.lane.b32.xlu0 %v335, 32
        %v425 = vpop.permute.xlu0 %424
        %426 = vrot.lane.b32.xlu0 %v347, 32
        %v427 = vpop.permute.xlu0 %426
        %428 = vrot.lane.b32.xlu0 %v359, 32
        %v429 = vpop.permute.xlu0 %428
        %430 = vrot.lane.b32.xlu0 %v371, 32
        %v431 = vpop.permute.xlu0 %430
        %432 = vrot.lane.b32.xlu0 %v383, 32
        %v433 = vpop.permute.xlu0 %432
        %434 = vrot.lane.b32.xlu0 %v395, 32
        %v435 = vpop.permute.xlu0 %434
        %436 = vrot.lane.b32.xlu0 %v407, 32
        %v437 = vpop.permute.xlu0 %436
        %438 = vrot.lane.b32.xlu0 %v419, 32
        %v439 = vpop.permute.xlu0 %438
        %vm440 = vcmask 1046528
        %v441 = vrot.slane %v259, 1
        %v442 = vrot.slane %v289, 1
        %v443 = vsel %vm440, %v441, %v442
        %v444 = vrot.slane %v260, 1
        %v445 = vrot.slane %v290, 1
        %v446 = vsel %vm440, %v444, %v445
        %v447 = vrot.slane %v261, 1
        %v448 = vrot.slane %v291, 1
        %v449 = vsel %vm440, %v447, %v448
        %v450 = vrot.slane %v262, 1
        %v451 = vrot.slane %v292, 1
        %v452 = vsel %vm440, %v450, %v451
        %v453 = vrot.slane %v263, 1
        %v454 = vrot.slane %v293, 1
        %v455 = vsel %vm440, %v453, %v454
        %v456 = vrot.slane %v264, 1
        %v457 = vrot.slane %v294, 1
        %v458 = vsel %vm440, %v456, %v457
        %v459 = vrot.slane %v265, 1
        %v460 = vrot.slane %v295, 1
        %v461 = vsel %vm440, %v459, %v460
        %v462 = vrot.slane %v266, 1
        %v463 = vrot.slane %v296, 1
        %v464 = vsel %vm440, %v462, %v463
        %v465 = vrot.slane %v267, 1
        %v466 = vrot.slane %v297, 1
        %v467 = vsel %vm440, %v465, %v466
        %v468 = vrot.slane %v268, 1
        %v469 = vrot.slane %v298, 1
        %v470 = vsel %vm440, %v468, %v469
        %471 = vrot.lane.b32.xlu0 %v443, 64
        %v472 = vpop.permute.xlu0 %471
        %473 = vrot.lane.b32.xlu0 %v446, 64
        %v474 = vpop.permute.xlu0 %473
        %475 = vrot.lane.b32.xlu0 %v449, 64
        %v476 = vpop.permute.xlu0 %475
        %477 = vrot.lane.b32.xlu0 %v452, 64
        %v478 = vpop.permute.xlu0 %477
        %479 = vrot.lane.b32.xlu0 %v455, 64
        %v480 = vpop.permute.xlu0 %479
        %481 = vrot.lane.b32.xlu0 %v458, 64
        %v482 = vpop.permute.xlu0 %481
        %483 = vrot.lane.b32.xlu0 %v461, 64
        %v484 = vpop.permute.xlu0 %483
        %485 = vrot.lane.b32.xlu0 %v464, 64
        %v486 = vpop.permute.xlu0 %485
        %487 = vrot.lane.b32.xlu0 %v467, 64
        %v488 = vpop.permute.xlu0 %487
        %489 = vrot.lane.b32.xlu0 %v470, 64
        %v490 = vpop.permute.xlu0 %489
        %vm491 = vcmask 261120
        %v493 = vsel %vm491, %v259, %v421
        %v495 = vsel %vm491, %v260, %v423
        %v497 = vsel %vm491, %v261, %v425
        %v499 = vsel %vm491, %v262, %v427
        %v501 = vsel %vm491, %v263, %v429
        %v503 = vsel %vm491, %v264, %v431
        %v505 = vsel %vm491, %v265, %v433
        %v507 = vsel %vm491, %v266, %v435
        %v509 = vsel %vm491, %v267, %v437
        %v511 = vsel %vm491, %v268, %v439
        %vm512 = vcmask 523264
        %v514 = vsel %vm512, %v493, %v472
        %v516 = vsel %vm512, %v495, %v474
        %v518 = vsel %vm512, %v497, %v476
        %v520 = vsel %vm512, %v499, %v478
        %v522 = vsel %vm512, %v501, %v480
        %v524 = vsel %vm512, %v503, %v482
        %v526 = vsel %vm512, %v505, %v484
        %v528 = vsel %vm512, %v507, %v486
        %v530 = vsel %vm512, %v509, %v488
        %v532 = vsel %vm512, %v511, %v490
        %v533 = vld [vmem:[%s1] sm:$0xf]
        %v534 = vld [vmem:[%s1 + $0x4] sm:$0xf]
        %v535 = vld [vmem:[%s1 + $0x8] sm:$0xf]
        %v536 = vld [vmem:[%s1 + $0xc] sm:$0xf]
        %v537 = vld [vmem:[%s1 + $0x10] sm:$0xf]
        %v538 = vld [vmem:[%s1 + $0x14] sm:$0xf]
        %v539 = vld [vmem:[%s1 + $0x18] sm:$0xf]
        %v540 = vld [vmem:[%s1 + $0x1c] sm:$0xf]
        %v541 = vld [vmem:[%s1 + $0x20] sm:$0xf]
        %v542 = vld [vmem:[%s1 + $0x24] sm:$0xf]
        %v543 = vld [vmem:[%s1 + $0x28] sm:$0xf]
        %v544 = vld [vmem:[%s1 + $0x2c] sm:$0xf]
        %v557 = vunpack.c.l.b16 %v533
        %v558 = vunpack.c.l.b16 %v534
        %v559 = vunpack.c.l.b16 %v535
        %v560 = vunpack.c.l.b16 %v536
        %v561 = vunpack.c.l.b16 %v537
        %v562 = vunpack.c.l.b16 %v538
        %v563 = vunpack.c.l.b16 %v539
        %v564 = vunpack.c.l.b16 %v540
        %v565 = vunpack.c.l.b16 %v541
        %v566 = vunpack.c.l.b16 %v542
        %v567 = vunpack.c.l.b16 %v543
        %v568 = vunpack.c.l.b16 %v544
        %v569 = vpack.c.b16 %v558, %v557
        %v570 = vpack.c.b16 %v560, %v559
        %v571 = vpack.c.b16 %v562, %v561
        %v572 = vpack.c.b16 %v564, %v563
        %v573 = vpack.c.b16 %v566, %v565
        %v574 = vpack.c.b16 %v568, %v567
        %vm581 = vcmask 785408
        %v582 = vsel %vm581, %v514, 0
        %v584 = vsel %vm581, %v516, 0
        %v586 = vsel %vm581, %v518, 0
        %v588 = vsel %vm581, %v520, 0
        %v590 = vsel %vm581, %v522, 0
        %v592 = vsel %vm581, %v524, 0
        %v594 = vsel %vm581, %v526, 0
        %v596 = vsel %vm581, %v528, 0
        %598 = vmatpush.bf16.msra.mxu0 0
        %599 = vmatpush.bf16.msra.mxu0 0
        %600 = vmatpush.bf16.msra.mxu0 %v574
        %601 = vmatpush.bf16.msra.mxu0 %v573
        %602 = vmatpush.bf16.msra.mxu0 %v572
        %603 = vmatpush.bf16.msra.mxu0 %v571
        %604 = vmatpush.bf16.msra.mxu0 %v570
        %605 = vmatpush.bf16.msra.mxu0 %v569
        %606 = vmatmul.bf16.gmra.mxu0 %v582
        %v607 = vpop.f32.mrf.mxu0
        %v608 = vadd.f32 0.0, %v607
        %v609 = vpop.f32.mrf.mxu0
        %v610 = vadd.f32 0.0, %v609
        %611 = vmatmul.bf16.gmra.mxu0 %v584
        %v612 = vpop.f32.mrf.mxu0
        %v613 = vadd.f32 0.0, %v612
        %v614 = vpop.f32.mrf.mxu0
        %v615 = vadd.f32 0.0, %v614
        %616 = vmatmul.bf16.gmra.mxu0 %v586
        %v617 = vpop.f32.mrf.mxu0
        %v618 = vadd.f32 0.0, %v617
        %v619 = vpop.f32.mrf.mxu0
        %v620 = vadd.f32 0.0, %v619
        %621 = vmatmul.bf16.gmra.mxu0 %v588
        %v622 = vpop.f32.mrf.mxu0
        %v623 = vadd.f32 0.0, %v622
        %v624 = vpop.f32.mrf.mxu0
        %v625 = vadd.f32 0.0, %v624
        %626 = vmatmul.bf16.gmra.mxu0 %v590
        %v627 = vpop.f32.mrf.mxu0
        %v628 = vadd.f32 0.0, %v627
        %v629 = vpop.f32.mrf.mxu0
        %v630 = vadd.f32 0.0, %v629
        %631 = vmatmul.bf16.gmra.mxu0 %v592
        %v632 = vpop.f32.mrf.mxu0
        %v633 = vadd.f32 0.0, %v632
        %v634 = vpop.f32.mrf.mxu0
        %v635 = vadd.f32 0.0, %v634
        %636 = vmatmul.bf16.gmra.mxu0 %v594
        %v637 = vpop.f32.mrf.mxu0
        %v638 = vadd.f32 0.0, %v637
        %v639 = vpop.f32.mrf.mxu0
        %v640 = vadd.f32 0.0, %v639
        %641 = vmatmul.bf16.gmra.mxu0 %v596
        %v642 = vpop.f32.mrf.mxu0
        %v643 = vadd.f32 0.0, %v642
        %v644 = vpop.f32.mrf.mxu0
        %v645 = vadd.f32 0.0, %v644
        %646 = vdwg.mxu0
        %647 = vst [vmem:[#allocation2] sm:$0xff] %v608
        %648 = vst [vmem:[#allocation2 + $0x8] sm:$0xff] %v610
        %649 = vst [vmem:[#allocation2 + $0x10] sm:$0xff] %v613
        %650 = vst [vmem:[#allocation2 + $0x18] sm:$0xff] %v615
        %651 = vst [vmem:[#allocation2 + $0x20] sm:$0xff] %v618
        %652 = vst [vmem:[#allocation2 + $0x28] sm:$0xff] %v620
        %653 = vst [vmem:[#allocation2 + $0x30] sm:$0xff] %v623
        %654 = vst [vmem:[#allocation2 + $0x38] sm:$0xff] %v625
        %655 = vst [vmem:[#allocation2 + $0x40] sm:$0xff] %v628
        %656 = vst [vmem:[#allocation2 + $0x48] sm:$0xff] %v630
        %657 = vst [vmem:[#allocation2 + $0x50] sm:$0xff] %v633
        %658 = vst [vmem:[#allocation2 + $0x58] sm:$0xff] %v635
        %659 = vst [vmem:[#allocation2 + $0x60] sm:$0xff] %v638
        %660 = vst [vmem:[#allocation2 + $0x68] sm:$0xff] %v640
        %661 = vst [vmem:[#allocation2 + $0x70] sm:$0xff] %v643
        %662 = vst [vmem:[#allocation2 + $0x78] sm:$0xff] %v645
        %s663 = scalar_lea.vmem %s1, 48
        %v664 = vld [vmem:[%s663] sm:$0xf]
        %v665 = vld [vmem:[%s663 + $0x4] sm:$0xf]
        %v666 = vld [vmem:[%s663 + $0x8] sm:$0xf]
        %v667 = vld [vmem:[%s663 + $0xc] sm:$0xf]
        %v668 = vld [vmem:[%s663 + $0x10] sm:$0xf]
        %v669 = vld [vmem:[%s663 + $0x14] sm:$0xf]
        %v670 = vld [vmem:[%s663 + $0x18] sm:$0xf]
        %v671 = vld [vmem:[%s663 + $0x1c] sm:$0xf]
        %v672 = vld [vmem:[%s663 + $0x20] sm:$0xf]
        %v673 = vld [vmem:[%s663 + $0x24] sm:$0xf]
        %v674 = vld [vmem:[%s663 + $0x28] sm:$0xf]
        %v675 = vld [vmem:[%s663 + $0x2c] sm:$0xf]
        %v688 = vunpack.c.l.b16 %v664
        %v689 = vunpack.c.l.b16 %v665
        %v690 = vunpack.c.l.b16 %v666
        %v691 = vunpack.c.l.b16 %v667
        %v692 = vunpack.c.l.b16 %v668
        %v693 = vunpack.c.l.b16 %v669
        %v694 = vunpack.c.l.b16 %v670
        %v695 = vunpack.c.l.b16 %v671
        %v696 = vunpack.c.l.b16 %v672
        %v697 = vunpack.c.l.b16 %v673
        %v698 = vunpack.c.l.b16 %v674
        %v699 = vunpack.c.l.b16 %v675
        %v700 = vpack.c.b16 %v689, %v688
        %v701 = vpack.c.b16 %v691, %v690
        %v702 = vpack.c.b16 %v693, %v692
        %v703 = vpack.c.b16 %v695, %v694
        %v704 = vpack.c.b16 %v697, %v696
        %v705 = vpack.c.b16 %v699, %v698
        %v712 = vsel %vm581, %v530, 0
        %714 = vmatpush.bf16.msra.mxu0 0
        %715 = vmatpush.bf16.msra.mxu0 0
        %716 = vmatpush.bf16.msra.mxu0 %v705
        %717 = vmatpush.bf16.msra.mxu0 %v704
        %718 = vmatpush.bf16.msra.mxu0 %v703
        %719 = vmatpush.bf16.msra.mxu0 %v702
        %720 = vmatpush.bf16.msra.mxu0 %v701
        %721 = vmatpush.bf16.msra.mxu0 %v700
        %722 = vmatmul.bf16.gmra.mxu0 %v584
        %v723 = vpop.f32.mrf.mxu0
        %v724 = vadd.f32 0.0, %v723
        %v725 = vpop.f32.mrf.mxu0
        %v726 = vadd.f32 0.0, %v725
        %727 = vmatmul.bf16.gmra.mxu0 %v586
        %v728 = vpop.f32.mrf.mxu0
        %v729 = vadd.f32 0.0, %v728
        %v730 = vpop.f32.mrf.mxu0
        %v731 = vadd.f32 0.0, %v730
        %732 = vmatmul.bf16.gmra.mxu0 %v588
        %v733 = vpop.f32.mrf.mxu0
        %v734 = vadd.f32 0.0, %v733
        %v735 = vpop.f32.mrf.mxu0
        %v736 = vadd.f32 0.0, %v735
        %737 = vmatmul.bf16.gmra.mxu0 %v590
        %v738 = vpop.f32.mrf.mxu0
        %v739 = vadd.f32 0.0, %v738
        %v740 = vpop.f32.mrf.mxu0
        %v741 = vadd.f32 0.0, %v740
        %742 = vmatmul.bf16.gmra.mxu0 %v592
        %v743 = vpop.f32.mrf.mxu0
        %v744 = vadd.f32 0.0, %v743
        %v745 = vpop.f32.mrf.mxu0
        %v746 = vadd.f32 0.0, %v745
        %747 = vmatmul.bf16.gmra.mxu0 %v594
        %v748 = vpop.f32.mrf.mxu0
        %v749 = vadd.f32 0.0, %v748
        %v750 = vpop.f32.mrf.mxu0
        %v751 = vadd.f32 0.0, %v750
        %752 = vmatmul.bf16.gmra.mxu0 %v596
        %v753 = vpop.f32.mrf.mxu0
        %v754 = vadd.f32 0.0, %v753
        %v755 = vpop.f32.mrf.mxu0
        %v756 = vadd.f32 0.0, %v755
        %757 = vmatmul.bf16.gmra.mxu0 %v712
        %v758 = vpop.f32.mrf.mxu0
        %v759 = vadd.f32 0.0, %v758
        %v760 = vpop.f32.mrf.mxu0
        %v761 = vadd.f32 0.0, %v760
        %762 = vdwg.mxu0
        %v763 = vld [vmem:[#allocation2] sm:$0xff]
        %v764 = vld [vmem:[#allocation2 + $0x8] sm:$0xff]
        %v765 = vld [vmem:[#allocation2 + $0x10] sm:$0xff]
        %v766 = vld [vmem:[#allocation2 + $0x18] sm:$0xff]
        %v767 = vld [vmem:[#allocation2 + $0x20] sm:$0xff]
        %v768 = vld [vmem:[#allocation2 + $0x28] sm:$0xff]
        %v769 = vld [vmem:[#allocation2 + $0x30] sm:$0xff]
        %v770 = vld [vmem:[#allocation2 + $0x38] sm:$0xff]
        %v771 = vld [vmem:[#allocation2 + $0x40] sm:$0xff]
        %v772 = vld [vmem:[#allocation2 + $0x48] sm:$0xff]
        %v773 = vld [vmem:[#allocation2 + $0x50] sm:$0xff]
        %v774 = vld [vmem:[#allocation2 + $0x58] sm:$0xff]
        %v775 = vld [vmem:[#allocation2 + $0x60] sm:$0xff]
        %v776 = vld [vmem:[#allocation2 + $0x68] sm:$0xff]
        %v777 = vld [vmem:[#allocation2 + $0x70] sm:$0xff]
        %v778 = vld [vmem:[#allocation2 + $0x78] sm:$0xff]
        %v779 = vadd.f32 %v763, %v724
        %v780 = vadd.f32 %v764, %v726
        %v781 = vadd.f32 %v765, %v729
        %v782 = vadd.f32 %v766, %v731
        %v783 = vadd.f32 %v767, %v734
        %v784 = vadd.f32 %v768, %v736
        %v785 = vadd.f32 %v769, %v739
        %v786 = vadd.f32 %v770, %v741
        %v787 = vadd.f32 %v771, %v744
        %v788 = vadd.f32 %v772, %v746
        %v789 = vadd.f32 %v773, %v749
        %v790 = vadd.f32 %v774, %v751
        %v791 = vadd.f32 %v775, %v754
        %v792 = vadd.f32 %v776, %v756
        %v793 = vadd.f32 %v777, %v759
        %v794 = vadd.f32 %v778, %v761
        %795 = vst [vmem:[#allocation2] sm:$0xff] %v779
        %796 = vst [vmem:[#allocation2 + $0x8] sm:$0xff] %v780
        %797 = vst [vmem:[#allocation2 + $0x10] sm:$0xff] %v781
        %798 = vst [vmem:[#allocation2 + $0x18] sm:$0xff] %v782
        %799 = vst [vmem:[#allocation2 + $0x20] sm:$0xff] %v783
        %800 = vst [vmem:[#allocation2 + $0x28] sm:$0xff] %v784
        %801 = vst [vmem:[#allocation2 + $0x30] sm:$0xff] %v785
        %802 = vst [vmem:[#allocation2 + $0x38] sm:$0xff] %v786
        %803 = vst [vmem:[#allocation2 + $0x40] sm:$0xff] %v787
        %804 = vst [vmem:[#allocation2 + $0x48] sm:$0xff] %v788
        %805 = vst [vmem:[#allocation2 + $0x50] sm:$0xff] %v789
        %806 = vst [vmem:[#allocation2 + $0x58] sm:$0xff] %v790
        %807 = vst [vmem:[#allocation2 + $0x60] sm:$0xff] %v791
        %808 = vst [vmem:[#allocation2 + $0x68] sm:$0xff] %v792
        %809 = vst [vmem:[#allocation2 + $0x70] sm:$0xff] %v793
        %810 = vst [vmem:[#allocation2 + $0x78] sm:$0xff] %v794
        %s811 = scalar_lea.vmem %s1, 96
        %v812 = vld [vmem:[%s811] sm:$0xf]
        %v813 = vld [vmem:[%s811 + $0x4] sm:$0xf]
        %v814 = vld [vmem:[%s811 + $0x8] sm:$0xf]
        %v815 = vld [vmem:[%s811 + $0xc] sm:$0xf]
        %v816 = vld [vmem:[%s811 + $0x10] sm:$0xf]
        %v817 = vld [vmem:[%s811 + $0x14] sm:$0xf]
        %v818 = vld [vmem:[%s811 + $0x18] sm:$0xf]
        %v819 = vld [vmem:[%s811 + $0x1c] sm:$0xf]
        %v820 = vld [vmem:[%s811 + $0x20] sm:$0xf]
        %v821 = vld [vmem:[%s811 + $0x24] sm:$0xf]
        %v822 = vld [vmem:[%s811 + $0x28] sm:$0xf]
        %v823 = vld [vmem:[%s811 + $0x2c] sm:$0xf]
        %v836 = vunpack.c.l.b16 %v812
        %v837 = vunpack.c.l.b16 %v813
        %v838 = vunpack.c.l.b16 %v814
        %v839 = vunpack.c.l.b16 %v815
        %v840 = vunpack.c.l.b16 %v816
        %v841 = vunpack.c.l.b16 %v817
        %v842 = vunpack.c.l.b16 %v818
        %v843 = vunpack.c.l.b16 %v819
        %v844 = vunpack.c.l.b16 %v820
        %v845 = vunpack.c.l.b16 %v821
        %v846 = vunpack.c.l.b16 %v822
        %v847 = vunpack.c.l.b16 %v823
        %v848 = vpack.c.b16 %v837, %v836
        %v849 = vpack.c.b16 %v839, %v838
        %v850 = vpack.c.b16 %v841, %v840
        %v851 = vpack.c.b16 %v843, %v842
        %v852 = vpack.c.b16 %v845, %v844
        %v853 = vpack.c.b16 %v847, %v846
        %v860 = vsel %vm581, %v532, 0
        %862 = vmatpush.bf16.msra.mxu0 0
        %863 = vmatpush.bf16.msra.mxu0 0
        %864 = vmatpush.bf16.msra.mxu0 %v853
        %865 = vmatpush.bf16.msra.mxu0 %v852
        %866 = vmatpush.bf16.msra.mxu0 %v851
        %867 = vmatpush.bf16.msra.mxu0 %v850
        %868 = vmatpush.bf16.msra.mxu0 %v849
        %869 = vmatpush.bf16.msra.mxu0 %v848
        %870 = vmatmul.bf16.gmra.mxu0 %v586
        %v871 = vpop.f32.mrf.mxu0
        %v872 = vadd.f32 0.0, %v871
        %v873 = vpop.f32.mrf.mxu0
        %v874 = vadd.f32 0.0, %v873
        %875 = vmatmul.bf16.gmra.mxu0 %v588
        %v876 = vpop.f32.mrf.mxu0
        %v877 = vadd.f32 0.0, %v876
        %v878 = vpop.f32.mrf.mxu0
        %v879 = vadd.f32 0.0, %v878
        %880 = vmatmul.bf16.gmra.mxu0 %v590
        %v881 = vpop.f32.mrf.mxu0
        %v882 = vadd.f32 0.0, %v881
        %v883 = vpop.f32.mrf.mxu0
        %v884 = vadd.f32 0.0, %v883
        %885 = vmatmul.bf16.gmra.mxu0 %v592
        %v886 = vpop.f32.mrf.mxu0
        %v887 = vadd.f32 0.0, %v886
        %v888 = vpop.f32.mrf.mxu0
        %v889 = vadd.f32 0.0, %v888
        %890 = vmatmul.bf16.gmra.mxu0 %v594
        %v891 = vpop.f32.mrf.mxu0
        %v892 = vadd.f32 0.0, %v891
        %v893 = vpop.f32.mrf.mxu0
        %v894 = vadd.f32 0.0, %v893
        %895 = vmatmul.bf16.gmra.mxu0 %v596
        %v896 = vpop.f32.mrf.mxu0
        %v897 = vadd.f32 0.0, %v896
        %v898 = vpop.f32.mrf.mxu0
        %v899 = vadd.f32 0.0, %v898
        %900 = vmatmul.bf16.gmra.mxu0 %v712
        %v901 = vpop.f32.mrf.mxu0
        %v902 = vadd.f32 0.0, %v901
        %v903 = vpop.f32.mrf.mxu0
        %v904 = vadd.f32 0.0, %v903
        %905 = vmatmul.bf16.gmra.mxu0 %v860
        %v906 = vpop.f32.mrf.mxu0
        %v907 = vadd.f32 0.0, %v906
        %v908 = vpop.f32.mrf.mxu0
        %v909 = vadd.f32 0.0, %v908
        %910 = vdwg.mxu0
        %v911 = vld [vmem:[#allocation2] sm:$0xff]
        %v912 = vld [vmem:[#allocation2 + $0x8] sm:$0xff]
        %v913 = vld [vmem:[#allocation2 + $0x10] sm:$0xff]
        %v914 = vld [vmem:[#allocation2 + $0x18] sm:$0xff]
        %v915 = vld [vmem:[#allocation2 + $0x20] sm:$0xff]
        %v916 = vld [vmem:[#allocation2 + $0x28] sm:$0xff]
        %v917 = vld [vmem:[#allocation2 + $0x30] sm:$0xff]
        %v918 = vld [vmem:[#allocation2 + $0x38] sm:$0xff]
        %v919 = vld [vmem:[#allocation2 + $0x40] sm:$0xff]
        %v920 = vld [vmem:[#allocation2 + $0x48] sm:$0xff]
        %v921 = vld [vmem:[#allocation2 + $0x50] sm:$0xff]
        %v922 = vld [vmem:[#allocation2 + $0x58] sm:$0xff]
        %v923 = vld [vmem:[#allocation2 + $0x60] sm:$0xff]
        %v924 = vld [vmem:[#allocation2 + $0x68] sm:$0xff]
        %v925 = vld [vmem:[#allocation2 + $0x70] sm:$0xff]
        %v926 = vld [vmem:[#allocation2 + $0x78] sm:$0xff]
        %v927 = vadd.f32 %v911, %v872
        %v928 = vadd.f32 %v912, %v874
        %v929 = vadd.f32 %v913, %v877
        %v930 = vadd.f32 %v914, %v879
        %v931 = vadd.f32 %v915, %v882
        %v932 = vadd.f32 %v916, %v884
        %v933 = vadd.f32 %v917, %v887
        %v934 = vadd.f32 %v918, %v889
        %v935 = vadd.f32 %v919, %v892
        %v936 = vadd.f32 %v920, %v894
        %v937 = vadd.f32 %v921, %v897
        %v938 = vadd.f32 %v922, %v899
        %v939 = vadd.f32 %v923, %v902
        %v940 = vadd.f32 %v924, %v904
        %v941 = vadd.f32 %v925, %v907
        %v942 = vadd.f32 %v926, %v909
        %943 = vst [vmem:[#allocation2] sm:$0xff] %v927
        %944 = vst [vmem:[#allocation2 + $0x8] sm:$0xff] %v928
        %945 = vst [vmem:[#allocation2 + $0x10] sm:$0xff] %v929
        %946 = vst [vmem:[#allocation2 + $0x18] sm:$0xff] %v930
        %947 = vst [vmem:[#allocation2 + $0x20] sm:$0xff] %v931
        %948 = vst [vmem:[#allocation2 + $0x28] sm:$0xff] %v932
        %949 = vst [vmem:[#allocation2 + $0x30] sm:$0xff] %v933
        %950 = vst [vmem:[#allocation2 + $0x38] sm:$0xff] %v934
        %951 = vst [vmem:[#allocation2 + $0x40] sm:$0xff] %v935
        %952 = vst [vmem:[#allocation2 + $0x48] sm:$0xff] %v936
        %953 = vst [vmem:[#allocation2 + $0x50] sm:$0xff] %v937
        %954 = vst [vmem:[#allocation2 + $0x58] sm:$0xff] %v938
        %955 = vst [vmem:[#allocation2 + $0x60] sm:$0xff] %v939
        %956 = vst [vmem:[#allocation2 + $0x68] sm:$0xff] %v940
        %957 = vst [vmem:[#allocation2 + $0x70] sm:$0xff] %v941
        %958 = vst [vmem:[#allocation2 + $0x78] sm:$0xff] %v942
        %v959 = vld [vmem:[#allocation2] sm:$0xff]
        %v960 = vld [vmem:[#allocation2 + $0x8] sm:$0xff]
        %v961 = vld [vmem:[#allocation2 + $0x10] sm:$0xff]
        %v962 = vld [vmem:[#allocation2 + $0x18] sm:$0xff]
        %v963 = vld [vmem:[#allocation2 + $0x20] sm:$0xff]
        %v964 = vld [vmem:[#allocation2 + $0x28] sm:$0xff]
        %v965 = vld [vmem:[#allocation2 + $0x30] sm:$0xff]
        %v966 = vld [vmem:[#allocation2 + $0x38] sm:$0xff]
        %v967 = vld [vmem:[#allocation2 + $0x40] sm:$0xff]
        %v968 = vld [vmem:[#allocation2 + $0x48] sm:$0xff]
        %v969 = vld [vmem:[#allocation2 + $0x50] sm:$0xff]
        %v970 = vld [vmem:[#allocation2 + $0x58] sm:$0xff]
        %v971 = vld [vmem:[#allocation2 + $0x60] sm:$0xff]
        %v972 = vld [vmem:[#allocation2 + $0x68] sm:$0xff]
        %v973 = vld [vmem:[#allocation2 + $0x70] sm:$0xff]
        %v974 = vld [vmem:[#allocation2 + $0x78] sm:$0xff]
        %v975 = vld [vmem:[%s2] sm:$0x1]
        %v977 = vperm.slane %v975, 0
        %v979 = vadd.f32 %v959, %v977
        %v980 = vadd.f32 %v960, %v977
        %v981 = vadd.f32 %v961, %v977
        %v982 = vadd.f32 %v962, %v977
        %v983 = vadd.f32 %v963, %v977
        %v984 = vadd.f32 %v964, %v977
        %v985 = vadd.f32 %v965, %v977
        %v986 = vadd.f32 %v966, %v977
        %v987 = vadd.f32 %v967, %v977
        %v988 = vadd.f32 %v968, %v977
        %v989 = vadd.f32 %v969, %v977
        %v990 = vadd.f32 %v970, %v977
        %v991 = vadd.f32 %v971, %v977
        %v992 = vadd.f32 %v972, %v977
        %v993 = vadd.f32 %v973, %v977
        %v994 = vadd.f32 %v974, %v977
        %v995 = vmax.f32 %v979, 0.0
        %v996 = vmax.f32 %v980, 0.0
        %v997 = vmax.f32 %v981, 0.0
        %v998 = vmax.f32 %v982, 0.0
        %v999 = vmax.f32 %v983, 0.0
        %v1000 = vmax.f32 %v984, 0.0
        %v1001 = vmax.f32 %v985, 0.0
        %v1002 = vmax.f32 %v986, 0.0
        %v1003 = vmax.f32 %v987, 0.0
        %v1004 = vmax.f32 %v988, 0.0
        %v1005 = vmax.f32 %v989, 0.0
        %v1006 = vmax.f32 %v990, 0.0
        %v1007 = vmax.f32 %v991, 0.0
        %v1008 = vmax.f32 %v992, 0.0
        %v1009 = vmax.f32 %v993, 0.0
        %v1010 = vmax.f32 %v994, 0.0
        %1011 = vst [vmem:[%s177] sm:$0xff] %v995
        %1012 = vst [vmem:[%s177 + $0x8] sm:$0xff] %v996
        %1013 = vst [vmem:[%s177 + $0x10] sm:$0xff] %v997
        %1014 = vst [vmem:[%s177 + $0x18] sm:$0xff] %v998
        %1015 = vst [vmem:[%s177 + $0x20] sm:$0xff] %v999
        %1016 = vst [vmem:[%s177 + $0x28] sm:$0xff] %v1000
        %1017 = vst [vmem:[%s177 + $0x30] sm:$0xff] %v1001
        %1018 = vst [vmem:[%s177 + $0x38] sm:$0xff] %v1002
        %1019 = vst [vmem:[%s177 + $0x40] sm:$0xff] %v1003
        %1020 = vst [vmem:[%s177 + $0x48] sm:$0xff] %v1004
        %1021 = vst [vmem:[%s177 + $0x50] sm:$0xff] %v1005
        %1022 = vst [vmem:[%s177 + $0x58] sm:$0xff] %v1006
        %1023 = vst [vmem:[%s177 + $0x60] sm:$0xff] %v1007
        %1024 = vst [vmem:[%s177 + $0x68] sm:$0xff] %v1008
        %1025 = vst [vmem:[%s177 + $0x70] sm:$0xff] %v1009
        %1026 = vst [vmem:[%s177 + $0x78] sm:$0xff] %v1010
        %s1027 = sand.u32 %s107, 1
        %s1028 = scalar_lea.sflag [#allocation4], %s1027
        %s1029 = sand.u32 %s107, 1
        %s1030 = smul.addr %s1029, 128
        %s1031 = scalar_lea.vmem [#allocation3], %s1030
        // Predicated region
        $region33: #{tpu_custom_call.1} parent=31 // pred_check
          %p1032 = pneg %p117
        $region34: #{tpu_custom_call.1} parent=31 // pred_check_branch
          %1034 = sbr.rel (%p1032) target = $region36
        $region35: #{tpu_custom_call.1} parent=31 // pred_region
          %s1035 = smul.u32 8, %s22
          %1037 = vsyncadd %s1028, 0
          %s1038 = smul.addr %s1035, 2
          %s1039 = smul.addr %s21, 32
          %s1040 = sadd.s32 %s1038, %s1039
          %s1041 = smul.addr %s1040, 8
          %s1042 = scalar_lea.hbm %s3, %s1041
          %s1043 = sshll.u32 %s1031, 4
          %s1044 = int_to_ptr.vmem [resolvable:$true] %s1043
          %s1045 = sshll.u32 %s1042, 4
          %s1046 = int_to_ptr.hbm [resolvable:$true] %s1045
          %1051 = dma.vmem_to_hbm [thread:$0]  %s1044, 2048, %s1046, %s1028, 128, 128, 8
        $region36: #{tpu_custom_call.1} parent=31 // pred_fallthru
          _
      $region32: #{tpu_custom_call.1} parent=5 // pred_fallthru
        _
      %p1052 = scmp.le.s32.totalorder 2, %s12
      // Predicated region
      $region37: #{tpu_custom_call.1} parent=5 // pred_check
        %p1053 = pneg %p1052
      $region38: #{tpu_custom_call.1} parent=5 // pred_check_branch
        %1055 = sbr.rel (%p1053) target = $region40
      $region39: #{tpu_custom_call.1} parent=5 // pred_region
        %s1056 = ssub.s32 %s12, 2
        // Predicated region
        $region41: #{tpu_custom_call.1} parent=39 // pred_check
          %p1057 = pneg %p123
        $region42: #{tpu_custom_call.1} parent=39 // pred_check_branch
          %1059 = sbr.rel (%p1057) target = $region44
        $region43: #{tpu_custom_call.1} parent=39 // pred_region
          %s1060 = sand.u32 %s108, 1
          %s1061 = scalar_lea.sflag [#allocation4], %s1060
          %s1062 = sand.u32 %s108, 1
          %s1063 = smul.addr %s1062, 128
          %s1064 = scalar_lea.vmem [#allocation3], %s1063
          %1066 = dma.done %s1061, 2048
        $region44: #{tpu_custom_call.1} parent=39 // pred_fallthru
          _
      $region40: #{tpu_custom_call.1} parent=5 // pred_fallthru
        _
    $region6: #{tpu_custom_call.1} parent=1 // loop_footer
      %s16 = sadd.s32 1, %s12
    $region7: #{tpu_custom_call.1} parent=1 // loop_footer_branch
      %11 = sbr.rel target = $region3
    $region8: #{tpu_custom_call.1} parent=1 // loop_exit
      _
    %1067 = vsyncpa [#allocation4], 1
    %s1068 = scalar_lea.sflag [#allocation4], 1
    %1069 = vsyncpa %s1068, 1

</llo_original>
